<compile_context>
chip_gen: v7x
topology: tpu7x:2x2x1
jax: 0.10.0
libtpu: 0.0.40
codegen_flags: <defaults>
</compile_context>

<pallas_src>
import functools

import jax
import jax.numpy as jnp
from jax import lax
from jax.experimental import pallas as pl
from jax.experimental.pallas import tpu as pltpu

TEMPERATURE = 2.0
BN_EPS = 1e-5

_VMEM_WORKSET_BUDGET = 16 * 1024 * 1024   # estimated live bytes per grid step
_VMEM_LIMIT_BYTES = 32 * 1024 * 1024      # scoped-VMEM limit (safe on v5e/v6e/v7x)


# ----------------------------- kernels ------------------------------------- #

def _single_pass_kernel(x_ref, wk_ref, wo_ref, bb_ref, o_ref, *, n_valid, needs_mask):
    """Whole (C, N_pad) spatial slab resident: plain softmax over the lane axis."""
    xb = x_ref[...].astype(wk_ref.dtype)
    s = jnp.dot(wk_ref[...], xb, preferred_element_type=jnp.float32)
    if needs_mask:  # zero-padded spatial tail must not pollute the softmax
        col = lax.broadcasted_iota(jnp.int32, s.shape, 1)
        s = jnp.where(col < n_valid, s, -jnp.inf)
    m = jnp.max(s, axis=-1, keepdims=True)
    e = jnp.exp(s - m)
    inv_l = pl.reciprocal(jnp.sum(e, axis=-1, keepdims=True), approx=True)
    prob = (e * inv_l).astype(wo_ref.dtype)
    o = jnp.dot(wo_ref[...], prob, preferred_element_type=jnp.float32)
    o_ref[...] = (o + bb_ref[...]).astype(o_ref.dtype)


def _two_pass_kernel(x_ref, wk_ref, wo_ref, bb_ref, o_ref, m_ref, l_ref, *,
                     n_valid, tile_n, needs_mask):
    """Tiled two-pass online softmax: pass 0 = (m, l) stats, pass 1 = emit."""
    p = pl.program_id(1)      # 0 = stats pass, 1 = output pass
    nt = pl.program_id(2)     # spatial tile index

    @pl.when(jnp.logical_and(p == 0, nt == 0))
    def _init():
        m_ref[...] = jnp.full_like(m_ref, -jnp.inf)
        l_ref[...] = jnp.zeros_like(l_ref)

    # Fused query_conv -> conv1d_k -> /temperature (bf16 MXU, f32 accumulate).
    xb = x_ref[...].astype(wk_ref.dtype)
    s = jnp.dot(wk_ref[...], xb, preferred_element_type=jnp.float32)
    if needs_mask:
        col = nt * tile_n + lax.broadcasted_iota(jnp.int32, s.shape, 1)
        s = jnp.where(col < n_valid, s, -jnp.inf)

    @pl.when(p == 0)
    def _stats():
        # Online running max / sum-of-exp over the lane (spatial) axis.
        m_prev = m_ref[...]
        m_new = jnp.maximum(m_prev, jnp.max(s, axis=-1, keepdims=True))
        l_ref[...] = (l_ref[...] * jnp.exp(m_prev - m_new)
                      + jnp.sum(jnp.exp(s - m_new), axis=-1, keepdims=True))
        m_ref[...] = m_new

    @pl.when(jnp.logical_and(p == 1, nt == 0))
    def _finalize_stats():
        # Softmax denominator -> EUP approximate reciprocal, once per batch item.
        l_ref[...] = pl.reciprocal(l_ref[...], approx=True)

    @pl.when(p == 1)
    def _emit():
        prob = (jnp.exp(s - m_ref[...]) * l_ref[...]).astype(wo_ref.dtype)  # l_ref = 1/l
        o = jnp.dot(wo_ref[...], prob, preferred_element_type=jnp.float32)
        o_ref[...] = (o + bb_ref[...]).astype(o_ref.dtype)


# ----------------------------- wrapper -------------------------------------- #

def _round_up(x, m):
    return pl.cdiv(x, m) * m


def _max_tile_n(c):
    """Largest lane tile (multiple of 128) whose estimated working set
    (double-buffered x + out blocks + f32 temps ~ 8 f32 copies of a (C, tn)
    slab) stays within the scoped-VMEM budget on every TPU generation."""
    tn = _VMEM_WORKSET_BUDGET // (8 * c * 4)
    return max(128, (tn // 128) * 128)


def _fuse_params(params, matmul_dtype):
    """Fold the 4 pointwise convs + temperature + BatchNorm into 2 weights + 1 bias.
    The query bias becomes (Wk @ bq)/T, constant along the softmax axis, and is
    therefore dropped (softmax is shift-invariant per row)."""
    wkq = (params["wk"] @ params["wq"]) / TEMPERATURE             # (C, C)
    wout = params["bn_scale"] * (params["wo"] @ params["wv"])     # (C, C)
    bout = params["bn_bias"]                                      # (C, 1)
    return wkq.astype(matmul_dtype), wout.astype(matmul_dtype), bout.astype(jnp.float32)


def ext_attention(x_nchw, params, *, matmul_dtype=jnp.bfloat16):
    """x_nchw: (B, C, H, W) float32. Returns (B, C, H, W)."""
    B, C, H, W = x_nchw.shape
    N = H * W
    wkq, wout, bout = _fuse_params(params, matmul_dtype)

    tn_max = _max_tile_n(C)
    n128 = _round_up(N, 128)

    const_args = (wkq, wout, bout)

    if n128 <= tn_max:
        # ---- fast path: one block per batch element, single softmax pass ----
        n_pad = n128
        x = x_nchw.reshape(B, C, N)
        if n_pad != N:
            x = jnp.pad(x, ((0, 0), (0, 0), (0, n_pad - N)))
        kernel = functools.partial(_single_pass_kernel,
                                   n_valid=N, needs_mask=(n_pad != N))
        grid = (B,)
        in_specs = [
            pl.BlockSpec((None, C, n_pad), lambda b: (b, 0, 0)),   # x (batch squeezed)
            pl.BlockSpec((C, C), lambda b: (0, 0)),                # (Wk@Wq)/T   (bf16)
            pl.BlockSpec((C, C), lambda b: (0, 0)),                # bn_scale*(Wo@Wv)
            pl.BlockSpec((C, 1), lambda b: (0, 0)),                # BN bias (f32)
        ]
        out_specs = pl.BlockSpec((None, C, n_pad), lambda b: (b, 0, 0))
        scratch_shapes = []
        dim_sem = ("parallel",)
    else:
        # ---- tiled path: two-pass online softmax over spatial tiles ----
        tn = tn_max
        n_pad = _round_up(N, tn)
        num_tiles = n_pad // tn
        x = x_nchw.reshape(B, C, N)
        if n_pad != N:
            x = jnp.pad(x, ((0, 0), (0, 0), (0, n_pad - N)))
        kernel = functools.partial(_two_pass_kernel,
                                   n_valid=N, tile_n=tn, needs_mask=(n_pad != N))
        grid = (B, 2, num_tiles)
        in_specs = [
            pl.BlockSpec((None, C, tn), lambda b, p, n: (b, 0, n)),
            pl.BlockSpec((C, C), lambda b, p, n: (0, 0)),
            pl.BlockSpec((C, C), lambda b, p, n: (0, 0)),
            pl.BlockSpec((C, 1), lambda b, p, n: (0, 0)),
        ]
        # Pass 0 pins the output index to tile 0 (never written back there);
        # pass 1 walks the tiles, so each output block hits HBM exactly once.
        out_specs = pl.BlockSpec((None, C, tn), lambda b, p, n: (b, 0, n * p))
        scratch_shapes = [
            pltpu.VMEM((C, 1), jnp.float32),   # running max  m
            pltpu.VMEM((C, 1), jnp.float32),   # running sum  l (then 1/l)
        ]
        dim_sem = ("parallel", "arbitrary", "arbitrary")

    out = pl.pallas_call(
        kernel,
        out_shape=jax.ShapeDtypeStruct((B, C, n_pad), x_nchw.dtype),
        grid_spec=pltpu.PrefetchScalarGridSpec(
            num_scalar_prefetch=0,
            grid=grid,
            in_specs=in_specs,
            out_specs=out_specs,
            scratch_shapes=scratch_shapes,
        ),
        compiler_params=pltpu.CompilerParams(
            dimension_semantics=dim_sem,
            vmem_limit_bytes=_VMEM_LIMIT_BYTES,
        ),
    )(x, *const_args)

    return out[:, :, :N].reshape(B, C, H, W)


# ----------------------------- test harness --------------------------------- #

def init_params(c, key):
    """Deterministic synthetic parameters with the module's shapes."""
    k1, k2, k3, k4 = jax.random.split(key, 4)
    # Conv2d(c, c, 1): weight (c, c, 1, 1) -> (c, c); bias (c,) -> (c, 1)
    wq = jax.random.uniform(k1, (c, c), jnp.float32, -0.5, 0.5)
    bq = jax.random.uniform(k2, (c, 1), jnp.float32, -0.5, 0.5)
    # Conv1d(c, c, 1, bias=False): weight (c, c, 1) -> (c, c)
    wk = jax.random.uniform(k3, (c, c), jnp.float32, -0.5, 0.5)
    # conv1d_v.weight = conv1d_k.weight.permute(1, 0, 2)  -> transpose
    wv = wk.T
    # outconv2dbn[0]: Conv2d(c, c, 1, bias=False) -> (c, c)
    wo = jax.random.uniform(k4, (c, c), jnp.float32, -0.5, 0.5)
    # BatchNorm2d(c) inference form with default init stats/affine
    gamma = jnp.ones((c, 1), jnp.float32)
    beta = jnp.zeros((c, 1), jnp.float32)
    running_mean = jnp.zeros((c, 1), jnp.float32)
    running_var = jnp.ones((c, 1), jnp.float32)
    bn_scale = gamma / jnp.sqrt(running_var + BN_EPS)
    bn_bias = beta - running_mean * bn_scale
    return dict(wq=wq, bq=bq, wk=wk, wv=wv, wo=wo,
                bn_scale=bn_scale, bn_bias=bn_bias)


def ext_attention_ref(x_nchw, params):
    """Plain-JAX f32 reference of the UNfused forward pass (checks the fusion
    algebra, including the dropped query-bias cancellation)."""
    B, C, H, W = x_nchw.shape
    x = x_nchw.reshape(B, C, H * W)
    q = jnp.einsum("oc,bcn->bon", params["wq"], x) + params["bq"][None]
    k = jnp.einsum("oc,bcn->bon", params["wk"], q)
    p = jax.nn.softmax(k / TEMPERATURE, axis=-1)
    v = jnp.einsum("oc,bcn->bon", params["wv"], p)
    o = jnp.einsum("oc,bcn->bon", params["wo"], v)
    o = o * params["bn_scale"][None] + params["bn_bias"][None]
    return o.reshape(B, C, H, W)


if __name__ == "__main__":
    B, C, H, W = 2, 4, 16, 16
    key = jax.random.PRNGKey(0)
    kx, kp = jax.random.split(key)
    x = jax.random.normal(kx, (B, C, H, W), jnp.float32)
    params = init_params(C, kp)

    out = ext_attention(x, params)
    out = jax.block_until_ready(out)

    ref = ext_attention_ref(x, params)
    assert out.shape == (B, C, H, W)
    # Tolerance relaxed from 1e-4: bf16 MXU inputs + EUP approximate reciprocal.
    assert jnp.allclose(out, ref, atol=2e-3, rtol=2e-2), "mismatch vs reference"

    print("KERNEL_OK")
</pallas_src>

<mosaic_0001>
module attributes {stable_mosaic.version = 11 : i64} {
  func.func @_single_pass_kernel(%arg0: i32, %arg1: memref<1x4x256xf32, #tpu.memory_space<vmem>>, %arg2: memref<4x4xbf16, #tpu.memory_space<vmem>>, %arg3: memref<4x4xbf16, #tpu.memory_space<vmem>>, %arg4: memref<4x1xf32, #tpu.memory_space<vmem>>, %arg5: memref<1x4x256xf32, #tpu.memory_space<vmem>>) attributes {dimension_semantics = [#tpu.dimension_semantics<parallel>], iteration_bounds = array<i64: 2>, scalar_prefetch = 0 : i64, scratch_operands = 0 : i64, tpu.core_type = #tpu.core_type<tc>, window_params = [{transform_indices = @transform_0, window_bounds = array<i64: 1, 4, 256>}, {pipeline_mode = #tpu.pipeline_mode<synchronous>, transform_indices = @transform_1, window_bounds = array<i64: 4, 4>}, {pipeline_mode = #tpu.pipeline_mode<synchronous>, transform_indices = @transform_2, window_bounds = array<i64: 4, 4>}, {pipeline_mode = #tpu.pipeline_mode<synchronous>, transform_indices = @transform_3, window_bounds = array<i64: 4, 1>}, {transform_indices = @transform_4, window_bounds = array<i64: 1, 4, 256>}]} {
    %c0 = arith.constant 0 : index
    %c0_0 = arith.constant 0 : index
    %c0_1 = arith.constant 0 : index
    %0 = vector.load %arg1[%c0, %c0_0, %c0_1] : memref<1x4x256xf32, #tpu.memory_space<vmem>>, vector<1x4x256xf32>
    %1 = vector.shape_cast %0 : vector<1x4x256xf32> to vector<4x256xf32>
    %2 = arith.truncf %1 : vector<4x256xf32> to vector<4x256xbf16>
    %c0_2 = arith.constant 0 : index
    %c0_3 = arith.constant 0 : index
    %3 = vector.load %arg2[%c0_2, %c0_3] : memref<4x4xbf16, #tpu.memory_space<vmem>>, vector<4x4xbf16>
    %cst = arith.constant dense<0.000000e+00> : vector<4x256xf32>
    %4 = tpu.matmul %3, %2, %cst {dimension_numbers = #tpu.dot_dimension_numbers<[1], [0], [0], [1], [0, 0, 1, 1], [], []>} : vector<4x4xbf16>, vector<4x256xbf16>, vector<4x256xf32> -> vector<4x256xf32>
    %cst_4 = arith.constant dense<0xFF800000> : vector<4xf32>
    %5 = vector.multi_reduction <maximumf>, %4, %cst_4 [1] : vector<4x256xf32> to vector<4xf32>
    %6 = vector.shape_cast %5 : vector<4xf32> to vector<4x1xf32>
    %7 = vector.broadcast %6 : vector<4x1xf32> to vector<4x256xf32>
    %8 = arith.subf %4, %7 : vector<4x256xf32>
    %9 = math.exp %8 : vector<4x256xf32>
    %cst_5 = arith.constant dense<0.000000e+00> : vector<4xf32>
    %10 = vector.multi_reduction <add>, %9, %cst_5 [1] : vector<4x256xf32> to vector<4xf32>
    %11 = vector.shape_cast %10 : vector<4xf32> to vector<4x1xf32>
    %12 = tpu.reciprocal %11 {approx = true} : vector<4x1xf32> -> vector<4x1xf32>
    %13 = vector.broadcast %12 : vector<4x1xf32> to vector<4x256xf32>
    %14 = arith.mulf %9, %13 : vector<4x256xf32>
    %15 = arith.truncf %14 : vector<4x256xf32> to vector<4x256xbf16>
    %c0_6 = arith.constant 0 : index
    %c0_7 = arith.constant 0 : index
    %16 = vector.load %arg3[%c0_6, %c0_7] : memref<4x4xbf16, #tpu.memory_space<vmem>>, vector<4x4xbf16>
    %cst_8 = arith.constant dense<0.000000e+00> : vector<4x256xf32>
    %17 = tpu.matmul %16, %15, %cst_8 {dimension_numbers = #tpu.dot_dimension_numbers<[1], [0], [0], [1], [0, 0, 1, 1], [], []>} : vector<4x4xbf16>, vector<4x256xbf16>, vector<4x256xf32> -> vector<4x256xf32>
    %c0_9 = arith.constant 0 : index
    %c0_10 = arith.constant 0 : index
    %18 = vector.load %arg4[%c0_9, %c0_10] : memref<4x1xf32, #tpu.memory_space<vmem>>, vector<4x1xf32>
    %19 = vector.broadcast %18 : vector<4x1xf32> to vector<4x256xf32>
    %20 = arith.addf %17, %19 : vector<4x256xf32>
    %c0_11 = arith.constant 0 : index
    %c0_12 = arith.constant 0 : index
    %c0_13 = arith.constant 0 : index
    %21 = vector.load %arg5[%c0_11, %c0_12, %c0_13] : memref<1x4x256xf32, #tpu.memory_space<vmem>>, vector<1x4x256xf32>
    %22 = vector.shape_cast %21 : vector<1x4x256xf32> to vector<4x256xf32>
    %23 = vector.shape_cast %20 : vector<4x256xf32> to vector<1x4x256xf32>
    tpu.vector_store %arg5[%c0_11, %c0_12, %c0_13], %23 {strides = array<i32>} : memref<1x4x256xf32, #tpu.memory_space<vmem>>, vector<1x4x256xf32>,
    return
  }
  func.func @transform_0(%arg0: i32) -> (i32, i32, i32) {
    %c0_i32 = arith.constant 0 : i32
    %c0_i32_0 = arith.constant 0 : i32
    %c0_i32_1 = arith.constant 0 : i32
    return %arg0, %c0_i32, %c0_i32_0 : i32, i32, i32
  }
  func.func @transform_1(%arg0: i32) -> (i32, i32) {
    %c0_i32 = arith.constant 0 : i32
    %c0_i32_0 = arith.constant 0 : i32
    %c0_i32_1 = arith.constant 0 : i32
    return %c0_i32, %c0_i32_0 : i32, i32
  }
  func.func @transform_2(%arg0: i32) -> (i32, i32) {
    %c0_i32 = arith.constant 0 : i32
    %c0_i32_0 = arith.constant 0 : i32
    %c0_i32_1 = arith.constant 0 : i32
    return %c0_i32, %c0_i32_0 : i32, i32
  }
  func.func @transform_3(%arg0: i32) -> (i32, i32) {
    %c0_i32 = arith.constant 0 : i32
    %c0_i32_0 = arith.constant 0 : i32
    %c0_i32_1 = arith.constant 0 : i32
    return %c0_i32, %c0_i32_0 : i32, i32
  }
  func.func @transform_4(%arg0: i32) -> (i32, i32, i32) {
    %c0_i32 = arith.constant 0 : i32
    %c0_i32_0 = arith.constant 0 : i32
    %c0_i32_1 = arith.constant 0 : i32
    return %arg0, %c0_i32, %c0_i32_0 : i32, i32, i32
  }
}

</mosaic_0001>

<llo_original>
// kernel: tpu_custom_call.1
$region0: #{tpu_custom_call.1}
  #allocation0 [shape = 'u32[]', space=smem, size = 0x4, offset = 0x4, fixed_abs, tag = 'smem constant byte address 0x4 - core index']
  #allocation1 [shape = 'u32[144,128]{1,0:T(1,128)}', space=vmem, size = 0x12000, scoped, tag = 'internal scratch']
  %s0 = inlined_call_operand.hbm [shape: f32[2,4,256], index: 0, kind: input, shape index: {}]
  %s1 = inlined_call_operand.vmem [shape: bf16[4,4], index: 1, kind: input, shape index: {}]
  %s2 = inlined_call_operand.vmem [shape: bf16[4,4], index: 2, kind: input, shape index: {}]
  %s3 = inlined_call_operand.vmem [shape: f32[4,1], index: 3, kind: input, shape index: {}]
  %s4 = inlined_call_operand.hbm [shape: f32[2,4,256], index: 4, kind: output, shape index: {}]
  %s5 = sld [smem:[#allocation0]]
  $region53: #{tpu_custom_call.1} parent=0
    _
  %s7 = ssub.s32 1, %s5
  %s8 = scalar_select 0, %s7, %s5
  $region1: #{tpu_custom_call.1} parent=0
    #allocation2 [shape = 'u8[8192]{0}', space=vmem, size = 0x2000, scoped, tag = 'input window, operand 0']
    #allocation3 [shape = 's32[2]{0}', space=sflag, size = 0x8, scoped, tag = 'scoped memory for tpu_custom_call.1']
    #allocation4 [shape = 's32[2]{0}', space=sflag, size = 0x8, scoped, tag = 'scoped memory for tpu_custom_call.1']
    #allocation5 [shape = 'u8[8192]{0}', space=vmem, size = 0x2000, scoped, tag = 'output window, operand 0']
    %9 = vsyncpa [#allocation3], 0
    %s10 = scalar_lea.sflag [#allocation3], 1
    %11 = vsyncpa %s10, 0
    %12 = vsyncpa [#allocation4], 0
    %s13 = scalar_lea.sflag [#allocation4], 1
    %14 = vsyncpa %s13, 0
    loop: start=0, step=1, limit=4
    $region2: #{tpu_custom_call.1} parent=1 // loop_pre_header
      _
    $region3: #{tpu_custom_call.1} parent=1 // loop_header
      %s16 = sphi 0, %s20
      %p17 = scmp.ge.s32.totalorder %s16, 4
      %s26 = sphi 0, %s28
      %s29 = sphi 0, %s26
      %s30 = sphi 0, %s29
      %s46 = sphi 0, %s30
      %s50 = sphi 0, %s50
      %s52 = sphi 0, %s50
      %s53 = sphi 0, %s52
      %s67 = sphi 0, %s53
      %s71 = sphi 0, %s71
      %s73 = sphi 0, %s71
      %s74 = sphi 0, %s73
      %s88 = sphi 0, %s74
      %s92 = sphi 0, %s92
      %s94 = sphi 0, %s92
      %s95 = sphi 0, %s94
      %s109 = sphi 0, %s95
      %s115 = sphi 0, %s117
      %s118 = sphi 0, %s115
      %s119 = sphi 0, %s118
      %s135 = sphi 0, %s119
    $region4: #{tpu_custom_call.1} parent=1 // loop_header_branch
      %19 = sbr.rel (%p17) target = $region8
    $region5: #{tpu_custom_call.1} parent=1 // loop_body
      %s21 = ssub.s32 %s16, 1
      %s22 = ssub.s32 %s16, 2
      %s23 = sadd.s32 %s16, 1
      %s24 = ssub.s32 %s16, %s23
      %p25 = scmp.eq.s32.totalorder %s24, 0
      %s27 = sadd.s32 %s26, 1
      %s28 = scalar_select %p25, %s26, %s27
      %p31 = pneg %p25
      %p32 = scmp.eq.s32.totalorder %s16, 1
      %p33 = por %p31, %p32
      %p34 = scmp.ne.s32.totalorder %s26, %s29
      %p35 = scmp.eq.s32.totalorder %s16, 0
      %p36 = por %p34, %p35
      %p37 = scmp.ne.s32.totalorder %s26, %s29
      %p38 = scmp.eq.s32.totalorder %s21, 1
      %p39 = por %p37, %p38
      %p40 = scmp.ne.s32.totalorder %s29, %s30
      %p41 = scmp.eq.s32.totalorder %s21, 0
      %p42 = por %p40, %p41
      %p43 = scmp.ne.s32.totalorder %s29, %s30
      %p44 = scmp.eq.s32.totalorder %s22, 1
      %p45 = por %p43, %p44
      %p47 = scmp.ne.s32.totalorder %s30, %s46
      %p48 = scmp.eq.s32.totalorder %s22, 0
      %p49 = por %p47, %p48
      %s51 = sadd.s32 %s50, 1
      %p54 = scmp.eq.s32.totalorder %s16, 1
      %p55 = scmp.ne.s32.totalorder %s50, %s52
      %p56 = scmp.eq.s32.totalorder %s16, 0
      %p57 = por %p55, %p56
      %p58 = scmp.ne.s32.totalorder %s50, %s52
      %p59 = scmp.eq.s32.totalorder %s21, 1
      %p60 = por %p58, %p59
      %p61 = scmp.ne.s32.totalorder %s52, %s53
      %p62 = scmp.eq.s32.totalorder %s21, 0
      %p63 = por %p61, %p62
      %p64 = scmp.ne.s32.totalorder %s52, %s53
      %p65 = scmp.eq.s32.totalorder %s22, 1
      %p66 = por %p64, %p65
      %p68 = scmp.ne.s32.totalorder %s53, %s67
      %p69 = scmp.eq.s32.totalorder %s22, 0
      %p70 = por %p68, %p69
      %s72 = sadd.s32 %s71, 1
      %p75 = scmp.eq.s32.totalorder %s16, 1
      %p76 = scmp.ne.s32.totalorder %s71, %s73
      %p77 = scmp.eq.s32.totalorder %s16, 0
      %p78 = por %p76, %p77
      %p79 = scmp.ne.s32.totalorder %s71, %s73
      %p80 = scmp.eq.s32.totalorder %s21, 1
      %p81 = por %p79, %p80
      %p82 = scmp.ne.s32.totalorder %s73, %s74
      %p83 = scmp.eq.s32.totalorder %s21, 0
      %p84 = por %p82, %p83
      %p85 = scmp.ne.s32.totalorder %s73, %s74
      %p86 = scmp.eq.s32.totalorder %s22, 1
      %p87 = por %p85, %p86
      %p89 = scmp.ne.s32.totalorder %s74, %s88
      %p90 = scmp.eq.s32.totalorder %s22, 0
      %p91 = por %p89, %p90
      %s93 = sadd.s32 %s92, 1
      %p96 = scmp.eq.s32.totalorder %s16, 1
      %p97 = scmp.ne.s32.totalorder %s92, %s94
      %p98 = scmp.eq.s32.totalorder %s16, 0
      %p99 = por %p97, %p98
      %p100 = scmp.ne.s32.totalorder %s92, %s94
      %p101 = scmp.eq.s32.totalorder %s21, 1
      %p102 = por %p100, %p101
      %p103 = scmp.ne.s32.totalorder %s94, %s95
      %p104 = scmp.eq.s32.totalorder %s21, 0
      %p105 = por %p103, %p104
      %p106 = scmp.ne.s32.totalorder %s94, %s95
      %p107 = scmp.eq.s32.totalorder %s22, 1
      %p108 = por %p106, %p107
      %p110 = scmp.ne.s32.totalorder %s95, %s109
      %p111 = scmp.eq.s32.totalorder %s22, 0
      %p112 = por %p110, %p111
      %s113 = ssub.s32 %s16, %s23
      %p114 = scmp.eq.s32.totalorder %s113, 0
      %s116 = sadd.s32 %s115, 1
      %s117 = scalar_select %p114, %s115, %s116
      %p120 = pneg %p114
      %p121 = scmp.eq.s32.totalorder %s16, 1
      %p122 = por %p120, %p121
      %p123 = scmp.ne.s32.totalorder %s115, %s118
      %p124 = scmp.eq.s32.totalorder %s16, 0
      %p125 = por %p123, %p124
      %p126 = scmp.ne.s32.totalorder %s115, %s118
      %p127 = scmp.eq.s32.totalorder %s21, 1
      %p128 = por %p126, %p127
      %p129 = scmp.ne.s32.totalorder %s118, %s119
      %p130 = scmp.eq.s32.totalorder %s21, 0
      %p131 = por %p129, %p130
      %p132 = scmp.ne.s32.totalorder %s118, %s119
      %p133 = scmp.eq.s32.totalorder %s22, 1
      %p134 = por %p132, %p133
      %p136 = scmp.ne.s32.totalorder %s119, %s135
      %p137 = scmp.eq.s32.totalorder %s22, 0
      %p138 = por %p136, %p137
      %p139 = scmp.le.s32.totalorder 1, %s16
      %p140 = scmp.lt.s32.totalorder %s16, 3
      %p141 = pnand %p139, %p140
      %p142 = pneg %p141
      // Predicated region
      $region9: #{tpu_custom_call.1} parent=5 // pred_check
        _
      $region10: #{tpu_custom_call.1} parent=5 // pred_check_branch
        %144 = sbr.rel (%p141) target = $region12
      $region11: #{tpu_custom_call.1} parent=5 // pred_region
        %s145 = ssub.s32 %s16, 1
        // Predicated region
        $region13: #{tpu_custom_call.1} parent=11 // pred_check
          %p146 = pneg %p63
        $region14: #{tpu_custom_call.1} parent=11 // pred_check_branch
          %148 = sbr.rel (%p146) target = $region16
        $region15: #{tpu_custom_call.1} parent=11 // pred_region
          _
        $region16: #{tpu_custom_call.1} parent=11 // pred_fallthru
          _
        // Predicated region
        $region17: #{tpu_custom_call.1} parent=11 // pred_check
          %p149 = pneg %p84
        $region18: #{tpu_custom_call.1} parent=11 // pred_check_branch
          %151 = sbr.rel (%p149) target = $region20
        $region19: #{tpu_custom_call.1} parent=11 // pred_region
          _
        $region20: #{tpu_custom_call.1} parent=11 // pred_fallthru
          _
        // Predicated region
        $region21: #{tpu_custom_call.1} parent=11 // pred_check
          %p152 = pneg %p105
        $region22: #{tpu_custom_call.1} parent=11 // pred_check_branch
          %154 = sbr.rel (%p152) target = $region24
        $region23: #{tpu_custom_call.1} parent=11 // pred_region
          _
        $region24: #{tpu_custom_call.1} parent=11 // pred_fallthru
          _
      $region12: #{tpu_custom_call.1} parent=5 // pred_fallthru
        _
      %p155 = scmp.lt.s32.totalorder %s16, 2
      // Predicated region
      $region25: #{tpu_custom_call.1} parent=5 // pred_check
        %p156 = pneg %p155
      $region26: #{tpu_custom_call.1} parent=5 // pred_check_branch
        %158 = sbr.rel (%p156) target = $region28
      $region27: #{tpu_custom_call.1} parent=5 // pred_region
        // Predicated region
        $region29: #{tpu_custom_call.1} parent=27 // pred_check
          %p159 = pneg %p36
        $region30: #{tpu_custom_call.1} parent=27 // pred_check_branch
          %161 = sbr.rel (%p159) target = $region32
        $region31: #{tpu_custom_call.1} parent=27 // pred_region
          %s162 = sand.u32 %s26, 1
          %s163 = scalar_lea.sflag [#allocation3], %s162
          %s164 = sand.u32 %s26, 1
          %s165 = smul.addr %s164, 8
          %s166 = scalar_lea.vmem [#allocation2], %s165
          %s168 = ssub.s32 128, 128
          %169 = vsyncadd %s163, %s168
          %s170 = smul.addr %s16, 2
          %s171 = smul.addr %s170, 64
          %s172 = scalar_lea.hbm %s0, %s171
          %s174 = sshll.u32 %s166, 4
          %s175 = int_to_ptr.vmem [resolvable:$true] %s174
          %177 = dma.hbm_to_vmem [thread:$0]  %s172, 128, %s175, %s163
        $region32: #{tpu_custom_call.1} parent=27 // pred_fallthru
          _
      $region28: #{tpu_custom_call.1} parent=5 // pred_fallthru
        _
      %p178 = scmp.le.s32.totalorder 1, %s16
      %p179 = scmp.lt.s32.totalorder %s16, 3
      %p180 = pnand %p178, %p179
      %p181 = pneg %p180
      // Predicated region
      $region33: #{tpu_custom_call.1} parent=5 // pred_check
        _
      $region34: #{tpu_custom_call.1} parent=5 // pred_check_branch
        %183 = sbr.rel (%p180) target = $region36
      $region35: #{tpu_custom_call.1} parent=5 // pred_region
        %s184 = ssub.s32 %s16, 1
        %s185 = sand.u32 %s29, 1
        %s186 = scalar_lea.sflag [#allocation3], %s185
        %s187 = sand.u32 %s29, 1
        %s188 = smul.addr %s187, 8
        %s189 = scalar_lea.vmem [#allocation2], %s188
        // Predicated region
        $region37: #{tpu_custom_call.1} parent=35 // pred_check
          %p190 = pneg %p42
        $region38: #{tpu_custom_call.1} parent=35 // pred_check_branch
          %192 = sbr.rel (%p190) target = $region40
        $region39: #{tpu_custom_call.1} parent=35 // pred_region
          %193 = dma.done %s186, 128
        $region40: #{tpu_custom_call.1} parent=35 // pred_fallthru
          _
        %s194 = sand.u32 %s29, 1
        %s195 = scalar_lea.sflag [#allocation3], %s194
        %s196 = sand.u32 %s29, 1
        %s197 = smul.addr %s196, 8
        %s198 = scalar_lea.vmem [#allocation2], %s197
        %p199 = pneg %p42
        %p200 = pneg %p39
        %p201 = pneg %p63
        %p202 = pneg %p60
        %p203 = pneg %p84
        %p204 = pneg %p81
        %p205 = pneg %p105
        %p206 = pneg %p102
        %p207 = pneg %p131
        %p208 = pneg %p128
        %s209 = sand.u32 %s118, 1
        %s210 = scalar_lea.sflag [#allocation4], %s209
        %s211 = sand.u32 %s118, 1
        %s212 = smul.addr %s211, 8
        %s213 = scalar_lea.vmem [#allocation5], %s212
        %v215 = vld [vmem:[%s189] sm:$0xff]
        %v217 = vcombine.high %v215, %v215
        %v219 = vpack.c.bf16 %v215, %v215
        %v220 = vpack.c.bf16 %v217, %v217
        %v221 = vld [vmem:[%s1] sm:$0x3]
        %vm222 = vcmask 31744
        %v224 = vsel %vm222, %v221, 0
        %vm226 = vcmask 1041408
        %v228 = vsel %vm226, %v219, 0
        %v231 = vsel %vm226, %v220, 0
        %233 = vmatprep.subr.bf16.mxu0 %v231
        %234 = vmatpush1.bf16.msra.mxu0 %v228
        %235 = vmatprep.subr.bf16.mxu0 0
        %236 = vmatpush1.bf16.msra.mxu0 0
        %237 = vmatprep.subr.bf16.mxu0 0
        %238 = vmatpush1.bf16.msra.mxu0 0
        %239 = vmatprep.subr.bf16.mxu0 0
        %240 = vmatpush1.bf16.msra.mxu0 0
        %241 = vmatprep.subr.bf16.mxu0 0
        %242 = vmatpush1.bf16.msra.mxu0 0
        %243 = vmatprep.subr.bf16.mxu0 0
        %244 = vmatpush1.bf16.msra.mxu0 0
        %245 = vmatprep.subr.bf16.mxu0 0
        %246 = vmatpush1.bf16.msra.mxu0 0
        %247 = vmatprep.subr.bf16.mxu0 0
        %248 = vmatpush1.bf16.msra.mxu0 0
        %249 = vmatprep.subr.bf16.mxu0 0
        %250 = vmatpush1.bf16.msra.mxu0 0
        %251 = vmatprep.subr.bf16.mxu0 0
        %252 = vmatpush1.bf16.msra.mxu0 0
        %253 = vmatprep.subr.bf16.mxu0 0
        %254 = vmatpush1.bf16.msra.mxu0 0
        %255 = vmatprep.subr.bf16.mxu0 0
        %256 = vmatpush1.bf16.msra.mxu0 0
        %257 = vmatprep.subr.bf16.mxu0 0
        %258 = vmatpush1.bf16.msra.mxu0 0
        %259 = vmatprep.subr.bf16.mxu0 0
        %260 = vmatpush1.bf16.msra.mxu0 0
        %261 = vmatprep.subr.bf16.mxu0 0
        %262 = vmatpush1.bf16.msra.mxu0 0
        %263 = vmatprep.subr.bf16.mxu0 0
        %264 = vmatpush1.bf16.msra.mxu0 0
        %265 = vmatprep.mubr.bf16.mxu0 0
        %266 = vmatmul.mubr.bf16.gmra.mrb[0].mxu0 %v224
        %v267 = vpop.f32.mrb[0].mxu0
        %v268 = vadd.f32 0.0, %v267
        %v269 = vpop.f32.mrb[0].mxu0
        %v270 = vadd.f32 0.0, %v269
        %v271 = vpop.f32.mrb[0].mxu0
        %v272 = vpop.f32.mrb[0].mxu0
        %273 = vdwg.mxu0
        %vm274 = vcmask 1043456
        %v275 = vsel %vm274, %v268, -inf
        %v276 = vsel %vm274, %v270, -inf
        %v277 = vmax.f32 %v275, %v276
        %278 = vmax.xlane.f32.xlu0 %v277
        %v279 = vpop.xlane.xlu0 %278
        %v280 = vsub.f32 %v268, %v279
        %v281 = vsub.f32 %v270, %v279
        %v282 = vmul.f32 %v280, 1.442695
        %v283 = vpow.pop %v282
        %v284 = vmul.f32 %v281, 1.442695
        %v285 = vpow.pop %v284
        %v286 = vsel %vm274, %v283, 0.0
        %v287 = vsel %vm274, %v285, 0.0
        %v288 = vadd.f32 %v286, %v287
        %289 = vadd.xlane.f32.xlu0 %v288
        %v290 = vpop.xlane.xlu0 %289
        %v291 = vrcp.pop %v290
        %v292 = vmul.f32 %v283, %v291
        %v293 = vmul.f32 %v285, %v291
        %v294 = vpack.c.bf16 %v292, %v292
        %v295 = vpack.c.bf16 %v293, %v293
        %v296 = vld [vmem:[%s2] sm:$0x3]
        %v297 = vld [vmem:[%s3] sm:$0xf]
        %299 = vset.pattern.permute.xlu0 0
        %300 = vperm.xlu0 %299, %v297
        %v301 = vpop.permute.xlu0 %300
        %v304 = vsel %vm222, %v296, 0
        %v307 = vsel %vm226, %v294, 0
        %v310 = vsel %vm226, %v295, 0
        %312 = vmatprep.subr.bf16.mxu0 %v310
        %313 = vmatpush1.bf16.msra.mxu0 %v307
        %314 = vmatprep.subr.bf16.mxu0 0
        %315 = vmatpush1.bf16.msra.mxu0 0
        %316 = vmatprep.subr.bf16.mxu0 0
        %317 = vmatpush1.bf16.msra.mxu0 0
        %318 = vmatprep.subr.bf16.mxu0 0
        %319 = vmatpush1.bf16.msra.mxu0 0
        %320 = vmatprep.subr.bf16.mxu0 0
        %321 = vmatpush1.bf16.msra.mxu0 0
        %322 = vmatprep.subr.bf16.mxu0 0
        %323 = vmatpush1.bf16.msra.mxu0 0
        %324 = vmatprep.subr.bf16.mxu0 0
        %325 = vmatpush1.bf16.msra.mxu0 0
        %326 = vmatprep.subr.bf16.mxu0 0
        %327 = vmatpush1.bf16.msra.mxu0 0
        %328 = vmatprep.subr.bf16.mxu0 0
        %329 = vmatpush1.bf16.msra.mxu0 0
        %330 = vmatprep.subr.bf16.mxu0 0
        %331 = vmatpush1.bf16.msra.mxu0 0
        %332 = vmatprep.subr.bf16.mxu0 0
        %333 = vmatpush1.bf16.msra.mxu0 0
        %334 = vmatprep.subr.bf16.mxu0 0
        %335 = vmatpush1.bf16.msra.mxu0 0
        %336 = vmatprep.subr.bf16.mxu0 0
        %337 = vmatpush1.bf16.msra.mxu0 0
        %338 = vmatprep.subr.bf16.mxu0 0
        %339 = vmatpush1.bf16.msra.mxu0 0
        %340 = vmatprep.subr.bf16.mxu0 0
        %341 = vmatpush1.bf16.msra.mxu0 0
        %342 = vmatprep.subr.bf16.mxu0 0
        %343 = vmatpush1.bf16.msra.mxu0 0
        %344 = vmatprep.mubr.bf16.mxu0 0
        %345 = vmatmul.mubr.bf16.gmra.mrb[0].mxu0 %v304
        %v346 = vpop.f32.mrb[0].mxu0
        %v347 = vadd.f32 %v301, %v346
        %v348 = vpop.f32.mrb[0].mxu0
        %v349 = vadd.f32 %v301, %v348
        %v350 = vpop.f32.mrb[0].mxu0
        %v351 = vpop.f32.mrb[0].mxu0
        %352 = vdwg.mxu0
        %v355 = vcombine.low %v347, %v349
        %357 = vst [vmem:[%s213] sm:$0xff] %v355
        %s358 = sand.u32 %s118, 1
        %s359 = scalar_lea.sflag [#allocation4], %s358
        %s360 = sand.u32 %s118, 1
        %s361 = smul.addr %s360, 8
        %s362 = scalar_lea.vmem [#allocation5], %s361
        // Predicated region
        $region41: #{tpu_custom_call.1} parent=35 // pred_check
          %p363 = pneg %p128
        $region42: #{tpu_custom_call.1} parent=35 // pred_check_branch
          %365 = sbr.rel (%p363) target = $region44
        $region43: #{tpu_custom_call.1} parent=35 // pred_region
          %s367 = ssub.s32 128, 128
          %368 = vsyncadd %s359, %s367
          %s369 = smul.addr %s21, 2
          %s370 = smul.addr %s369, 64
          %s371 = scalar_lea.hbm %s4, %s370
          %s373 = sshll.u32 %s362, 4
          %s374 = int_to_ptr.vmem [resolvable:$true] %s373
          %376 = dma.vmem_to_hbm [thread:$0]  %s374, 128, %s371, %s359
        $region44: #{tpu_custom_call.1} parent=35 // pred_fallthru
          _
      $region36: #{tpu_custom_call.1} parent=5 // pred_fallthru
        _
      %p377 = scmp.le.s32.totalorder 2, %s16
      // Predicated region
      $region45: #{tpu_custom_call.1} parent=5 // pred_check
        %p378 = pneg %p377
      $region46: #{tpu_custom_call.1} parent=5 // pred_check_branch
        %380 = sbr.rel (%p378) target = $region48
      $region47: #{tpu_custom_call.1} parent=5 // pred_region
        %s381 = ssub.s32 %s16, 2
        // Predicated region
        $region49: #{tpu_custom_call.1} parent=47 // pred_check
          %p382 = pneg %p134
        $region50: #{tpu_custom_call.1} parent=47 // pred_check_branch
          %384 = sbr.rel (%p382) target = $region52
        $region51: #{tpu_custom_call.1} parent=47 // pred_region
          %s385 = sand.u32 %s119, 1
          %s386 = scalar_lea.sflag [#allocation4], %s385
          %s387 = sand.u32 %s119, 1
          %s388 = smul.addr %s387, 8
          %s389 = scalar_lea.vmem [#allocation5], %s388
          %390 = dma.done %s386, 128
        $region52: #{tpu_custom_call.1} parent=47 // pred_fallthru
          _
      $region48: #{tpu_custom_call.1} parent=5 // pred_fallthru
        _
    $region6: #{tpu_custom_call.1} parent=1 // loop_footer
      %s20 = sadd.s32 1, %s16
    $region7: #{tpu_custom_call.1} parent=1 // loop_footer_branch
      %15 = sbr.rel target = $region3
    $region8: #{tpu_custom_call.1} parent=1 // loop_exit
      _
    %391 = vsyncpa [#allocation3], 1
    %s392 = scalar_lea.sflag [#allocation3], 1
    %393 = vsyncpa %s392, 1
    %394 = vsyncpa [#allocation4], 1
    %s395 = scalar_lea.sflag [#allocation4], 1
    %396 = vsyncpa %s395, 1

</llo_original>
